<compile_context>
chip_gen: v5e
topology: v5e:2x2
jax: 0.10.0
libtpu: 0.0.40
codegen_flags: <defaults>
</compile_context>

<pallas_src>
import functools

import jax
import jax.numpy as jnp
from jax import lax
from jax.experimental import pallas as pl
from jax.experimental.pallas import tpu as pltpu


def _lst_kernel(theta_ref, x_ref, crops_ref, mx_ref, my_ref, *, H, W, ts):
    """One grid step over a (1, TC, TS) flat-spatial image tile.

    theta_ref : SMEM (N, 3) f32 scalar-prefetch, rows are [s, x, y]
    x_ref     : VMEM (1, TC, TS) image tile, flat spatial index = h*W + w
    crops_ref : VMEM (1, TC, TS) soft-crop output tile
    mx_ref    : VMEM (1, 1, W) m_x for this sample (written once per n)
    my_ref    : VMEM (1, 1, H) m_y for this sample (written once per n)
    """
    n = pl.program_id(0)
    c_blk = pl.program_id(1)
    s_blk = pl.program_id(2)

    tx = theta_ref[n, 1]          # scalar f32 from SMEM
    ty = theta_ref[n, 2]

    step_x = jnp.float32(2.0 / max(W - 1, 1))
    step_y = jnp.float32(2.0 / max(H - 1, 1))
    w_f = jnp.float32(W)

    # Flat spatial indices covered by this tile (lane axis), decomposed into (h, w).
    idx = (s_blk * ts + lax.broadcasted_iota(jnp.int32, (1, 1, ts), 2)).astype(jnp.float32)
    h_idx = jnp.floor(idx / w_f)          # exact for H*W < 2**24
    w_idx = idx - h_idx * w_f

    m_x_t = jnp.maximum(0.0, 1.0 - jnp.abs(tx - (w_idx * step_x - 1.0)))   # (1,1,TS)
    m_y_t = jnp.maximum(0.0, 1.0 - jnp.abs(ty - (h_idx * step_y - 1.0)))   # (1,1,TS)
    window = m_x_t * m_y_t                                                 # (1,1,TS)

    crops_ref[...] = (x_ref[...].astype(jnp.float32) * window).astype(crops_ref.dtype)

    # Saved-tensor style m_x / m_y outputs: compute + write once per sample.
    @pl.when(jnp.logical_and(c_blk == 0, s_blk == 0))
    def _():
        iw = lax.broadcasted_iota(jnp.int32, (1, 1, W), 2).astype(jnp.float32)
        ih = lax.broadcasted_iota(jnp.int32, (1, 1, H), 2).astype(jnp.float32)
        mx_ref[...] = jnp.maximum(0.0, 1.0 - jnp.abs(tx - (iw * step_x - 1.0)))
        my_ref[...] = jnp.maximum(0.0, 1.0 - jnp.abs(ty - (ih * step_y - 1.0)))


def localized_spatial_transformer(theta, x):
    """theta: (N, 3) f32 rows [s, x, y]; x: (N, C, H, W) full-res image stand-in.

    Returns (crops, m_x, m_y) with torch shapes (N,C,H,W), (N,W,1), (N,1,H).
    """
    N, C, H, W = x.shape
    assert theta.shape == (N, 3)
    HW = H * W

    # Lane-dense flat-spatial slab; merging trailing dims is a free (metadata) reshape.
    x_flat = x.reshape(N, C, HW)

    # Tile sizes: keep W*H whole if small, otherwise 128-multiple spatial chunks.
    tc = C if C <= 8 else 8                      # full C or a sublane-aligned chunk
    itemsize = jnp.dtype(x.dtype).itemsize
    target = 1 << 20                             # ~1 MiB per x tile
    if tc * HW * itemsize <= target or HW <= 128:
        ts = HW
    else:
        ts = int(max(128, (target // (tc * itemsize)) // 128 * 128))

    grid = (N, pl.cdiv(C, tc), pl.cdiv(HW, ts))
    block_bytes = tc * ts * itemsize
    vmem_limit = int(min(64 << 20, max(16 << 20, 8 * block_bytes)))

    kernel = functools.partial(_lst_kernel, H=H, W=W, ts=ts)

    grid_spec = pltpu.PrefetchScalarGridSpec(
        num_scalar_prefetch=1,                   # theta -> SMEM, scalar reads in-kernel
        grid=grid,
        in_specs=[
            pl.BlockSpec((1, tc, ts), lambda n, c, s, theta_ref: (n, c, s)),
        ],
        out_specs=(
            pl.BlockSpec((1, tc, ts), lambda n, c, s, theta_ref: (n, c, s)),
            pl.BlockSpec((1, 1, W), lambda n, c, s, theta_ref: (n, 0, 0)),
            pl.BlockSpec((1, 1, H), lambda n, c, s, theta_ref: (n, 0, 0)),
        ),
    )

    crops_flat, m_x, m_y = pl.pallas_call(
        kernel,
        out_shape=(
            jax.ShapeDtypeStruct((N, C, HW), x.dtype),     # crops (flat spatial)
            jax.ShapeDtypeStruct((N, 1, W), jnp.float32),  # m_x (lane-oriented)
            jax.ShapeDtypeStruct((N, 1, H), jnp.float32),  # m_y
        ),
        grid_spec=grid_spec,
        compiler_params=pltpu.CompilerParams(
            # m_x/m_y blocks are revisited across the C/spatial axes -> arbitrary;
            # batch axis is parallel (v7x megacore sharding).
            dimension_semantics=("parallel", "arbitrary", "arbitrary"),
            vmem_limit_bytes=vmem_limit,
        ),
    )(theta.astype(jnp.float32), x_flat)

    crops = crops_flat.reshape(N, C, H, W)
    # torch unsqueeze conventions: m_x -> (N, W, 1), m_y -> (N, 1, H)
    return crops, jnp.swapaxes(m_x, 1, 2), m_y


def _reference(theta, x):
    """Pure-JAX reference mirroring the torch tensor math (correctly oriented)."""
    N, C, H, W = x.shape
    gx = jnp.arange(W, dtype=jnp.float32) * (2.0 / max(W - 1, 1)) - 1.0
    gy = jnp.arange(H, dtype=jnp.float32) * (2.0 / max(H - 1, 1)) - 1.0
    m_x = jnp.maximum(0.0, 1.0 - jnp.abs(theta[:, 1:2] - gx[None, :]))   # (N, W)
    m_y = jnp.maximum(0.0, 1.0 - jnp.abs(theta[:, 2:3] - gy[None, :]))   # (N, H)
    crops = x * m_y[:, None, :, None] * m_x[:, None, None, :]
    return crops, m_x[:, :, None], m_y[:, None, :]


def _check(theta, x):
    N, C, H, W = x.shape
    crops, m_x, m_y = jax.block_until_ready(localized_spatial_transformer(theta, x))
    crops_r, m_x_r, m_y_r = _reference(theta, x)
    assert crops.shape == (N, C, H, W)
    assert m_x.shape == (N, W, 1) and m_y.shape == (N, 1, H)
    assert jnp.allclose(crops, crops_r, atol=1e-5, rtol=1e-5)
    assert jnp.allclose(m_x, m_x_r, atol=1e-6)
    assert jnp.allclose(m_y, m_y_r, atol=1e-6)


if __name__ == "__main__":
    key = jax.random.PRNGKey(0)
    k_theta, k_img, k_img2 = jax.random.split(key, 3)

    N, C = 2, 4
    H, W = 16, 16   # small stand-in for trunc_size = torch.Size([100, 100])

    # theta rows are [s, x, y]; x/y already clamped to [-1, 1] as the module guarantees
    theta = jax.random.uniform(k_theta, (N, 3), dtype=jnp.float32, minval=-1.0, maxval=1.0)
    x = jax.random.normal(k_img, (N, C, H, W), dtype=jnp.float32)
    _check(theta, x)

    # non-square spatial check (H != W) to validate the fixed mask orientation
    x_ns = jax.random.normal(k_img2, (N, C, 8, 16), dtype=jnp.float32)
    _check(theta, x_ns)

    print("KERNEL_OK")
</pallas_src>

<mosaic_0001>
module attributes {stable_mosaic.version = 11 : i64} {
  func.func @_lst_kernel(%arg0: i32, %arg1: i32, %arg2: i32, %arg3: memref<2x3xf32, #tpu.memory_space<smem>>, %arg4: memref<1x4x256xf32, #tpu.memory_space<vmem>>, %arg5: memref<1x4x256xf32, #tpu.memory_space<vmem>>, %arg6: memref<1x1x16xf32, #tpu.memory_space<vmem>>, %arg7: memref<1x1x16xf32, #tpu.memory_space<vmem>>) attributes {dimension_semantics = [#tpu.dimension_semantics<parallel>, #tpu.dimension_semantics<arbitrary>, #tpu.dimension_semantics<arbitrary>], iteration_bounds = array<i64: 2, 1, 1>, scalar_prefetch = 1 : i64, scratch_operands = 0 : i64, tpu.core_type = #tpu.core_type<tc>, window_params = [{transform_indices = @transform_0, window_bounds = array<i64: 1, 4, 256>}, {transform_indices = @transform_1, window_bounds = array<i64: 1, 4, 256>}, {transform_indices = @transform_2, window_bounds = array<i64: 1, 1, 16>}, {transform_indices = @transform_3, window_bounds = array<i64: 1, 1, 16>}]} {
    %0 = arith.index_cast %arg0 : i32 to index
    %c1 = arith.constant 1 : index
    %1 = memref.load %arg3[%0, %c1] : memref<2x3xf32, #tpu.memory_space<smem>>
    %2 = arith.index_cast %arg0 : i32 to index
    %c2 = arith.constant 2 : index
    %3 = memref.load %arg3[%2, %c2] : memref<2x3xf32, #tpu.memory_space<smem>>
    %c256_i32 = arith.constant 256 : i32
    %4 = arith.muli %arg2, %c256_i32 : i32
    %5 = tpu.iota {dimensions = array<i32: 2>} : vector<1x1x256xi32>
    %6 = vector.broadcast %4 : i32 to vector<1x1x256xi32>
    %7 = arith.addi %6, %5 : vector<1x1x256xi32>
    %8 = arith.sitofp %7 : vector<1x1x256xi32> to vector<1x1x256xf32>
    %cst = arith.constant 1.600000e+01 : f32
    %9 = vector.broadcast %cst : f32 to vector<1x1x256xf32>
    %10 = arith.divf %8, %9 : vector<1x1x256xf32>
    %11 = math.floor %10 : vector<1x1x256xf32>
    %cst_0 = arith.constant 1.600000e+01 : f32
    %12 = vector.broadcast %cst_0 : f32 to vector<1x1x256xf32>
    %13 = arith.mulf %11, %12 : vector<1x1x256xf32>
    %14 = arith.subf %8, %13 : vector<1x1x256xf32>
    %cst_1 = arith.constant 0.13333334 : f32
    %15 = vector.broadcast %cst_1 : f32 to vector<1x1x256xf32>
    %16 = arith.mulf %14, %15 : vector<1x1x256xf32>
    %cst_2 = arith.constant 1.000000e+00 : f32
    %17 = vector.broadcast %cst_2 : f32 to vector<1x1x256xf32>
    %18 = arith.subf %16, %17 : vector<1x1x256xf32>
    %19 = vector.broadcast %1 : f32 to vector<1x1x256xf32>
    %20 = arith.subf %19, %18 : vector<1x1x256xf32>
    %21 = math.absf %20 : vector<1x1x256xf32>
    %cst_3 = arith.constant 1.000000e+00 : f32
    %22 = vector.broadcast %cst_3 : f32 to vector<1x1x256xf32>
    %23 = arith.subf %22, %21 : vector<1x1x256xf32>
    %cst_4 = arith.constant 0.000000e+00 : f32
    %24 = vector.broadcast %cst_4 : f32 to vector<1x1x256xf32>
    %25 = arith.maximumf %24, %23 : vector<1x1x256xf32>
    %cst_5 = arith.constant 0.13333334 : f32
    %26 = vector.broadcast %cst_5 : f32 to vector<1x1x256xf32>
    %27 = arith.mulf %11, %26 : vector<1x1x256xf32>
    %cst_6 = arith.constant 1.000000e+00 : f32
    %28 = vector.broadcast %cst_6 : f32 to vector<1x1x256xf32>
    %29 = arith.subf %27, %28 : vector<1x1x256xf32>
    %30 = vector.broadcast %3 : f32 to vector<1x1x256xf32>
    %31 = arith.subf %30, %29 : vector<1x1x256xf32>
    %32 = math.absf %31 : vector<1x1x256xf32>
    %cst_7 = arith.constant 1.000000e+00 : f32
    %33 = vector.broadcast %cst_7 : f32 to vector<1x1x256xf32>
    %34 = arith.subf %33, %32 : vector<1x1x256xf32>
    %cst_8 = arith.constant 0.000000e+00 : f32
    %35 = vector.broadcast %cst_8 : f32 to vector<1x1x256xf32>
    %36 = arith.maximumf %35, %34 : vector<1x1x256xf32>
    %37 = arith.mulf %25, %36 : vector<1x1x256xf32>
    %c0 = arith.constant 0 : index
    %c0_9 = arith.constant 0 : index
    %c0_10 = arith.constant 0 : index
    %38 = vector.load %arg4[%c0, %c0_9, %c0_10] : memref<1x4x256xf32, #tpu.memory_space<vmem>>, vector<1x4x256xf32>
    %39 = vector.broadcast %37 : vector<1x1x256xf32> to vector<1x4x256xf32>
    %40 = arith.mulf %38, %39 : vector<1x4x256xf32>
    %c0_11 = arith.constant 0 : index
    %c0_12 = arith.constant 0 : index
    %c0_13 = arith.constant 0 : index
    %41 = vector.load %arg5[%c0_11, %c0_12, %c0_13] : memref<1x4x256xf32, #tpu.memory_space<vmem>>, vector<1x4x256xf32>
    tpu.vector_store %arg5[%c0_11, %c0_12, %c0_13], %40 {strides = array<i32>} : memref<1x4x256xf32, #tpu.memory_space<vmem>>, vector<1x4x256xf32>,
    %c0_i32 = arith.constant 0 : i32
    %42 = arith.cmpi eq, %arg1, %c0_i32 : i32
    %c0_i32_14 = arith.constant 0 : i32
    %43 = arith.cmpi eq, %arg2, %c0_i32_14 : i32
    %44 = arith.andi %42, %43 : i1
    %45 = arith.extui %44 : i1 to i32
    %cst_15 = arith.constant 0.13333334 : f32
    %cst_16 = arith.constant 0.13333334 : f32
    %c0_i32_17 = arith.constant 0 : i32
    %46 = arith.cmpi ne, %45, %c0_i32_17 : i32
    scf.if %46 {
      %47 = tpu.iota {dimensions = array<i32: 2>} : vector<1x1x16xi32>
      %48 = arith.sitofp %47 : vector<1x1x16xi32> to vector<1x1x16xf32>
      %49 = tpu.iota {dimensions = array<i32: 2>} : vector<1x1x16xi32>
      %50 = arith.sitofp %49 : vector<1x1x16xi32> to vector<1x1x16xf32>
      %51 = vector.broadcast %cst_15 : f32 to vector<1x1x16xf32>
      %52 = arith.mulf %48, %51 : vector<1x1x16xf32>
      %cst_18 = arith.constant 1.000000e+00 : f32
      %53 = vector.broadcast %cst_18 : f32 to vector<1x1x16xf32>
      %54 = arith.subf %52, %53 : vector<1x1x16xf32>
      %55 = vector.broadcast %1 : f32 to vector<1x1x16xf32>
      %56 = arith.subf %55, %54 : vector<1x1x16xf32>
      %57 = math.absf %56 : vector<1x1x16xf32>
      %cst_19 = arith.constant 1.000000e+00 : f32
      %58 = vector.broadcast %cst_19 : f32 to vector<1x1x16xf32>
      %59 = arith.subf %58, %57 : vector<1x1x16xf32>
      %cst_20 = arith.constant 0.000000e+00 : f32
      %60 = vector.broadcast %cst_20 : f32 to vector<1x1x16xf32>
      %61 = arith.maximumf %60, %59 : vector<1x1x16xf32>
      %c0_21 = arith.constant 0 : index
      %c0_22 = arith.constant 0 : index
      %c0_23 = arith.constant 0 : index
      %62 = vector.load %arg6[%c0_21, %c0_22, %c0_23] : memref<1x1x16xf32, #tpu.memory_space<vmem>>, vector<1x1x16xf32>
      tpu.vector_store %arg6[%c0_21, %c0_22, %c0_23], %61 {strides = array<i32>} : memref<1x1x16xf32, #tpu.memory_space<vmem>>, vector<1x1x16xf32>,
      %63 = vector.broadcast %cst_16 : f32 to vector<1x1x16xf32>
      %64 = arith.mulf %50, %63 : vector<1x1x16xf32>
      %cst_24 = arith.constant 1.000000e+00 : f32
      %65 = vector.broadcast %cst_24 : f32 to vector<1x1x16xf32>
      %66 = arith.subf %64, %65 : vector<1x1x16xf32>
      %67 = vector.broadcast %3 : f32 to vector<1x1x16xf32>
      %68 = arith.subf %67, %66 : vector<1x1x16xf32>
      %69 = math.absf %68 : vector<1x1x16xf32>
      %cst_25 = arith.constant 1.000000e+00 : f32
      %70 = vector.broadcast %cst_25 : f32 to vector<1x1x16xf32>
      %71 = arith.subf %70, %69 : vector<1x1x16xf32>
      %cst_26 = arith.constant 0.000000e+00 : f32
      %72 = vector.broadcast %cst_26 : f32 to vector<1x1x16xf32>
      %73 = arith.maximumf %72, %71 : vector<1x1x16xf32>
      %c0_27 = arith.constant 0 : index
      %c0_28 = arith.constant 0 : index
      %c0_29 = arith.constant 0 : index
      %74 = vector.load %arg7[%c0_27, %c0_28, %c0_29] : memref<1x1x16xf32, #tpu.memory_space<vmem>>, vector<1x1x16xf32>
      tpu.vector_store %arg7[%c0_27, %c0_28, %c0_29], %73 {strides = array<i32>} : memref<1x1x16xf32, #tpu.memory_space<vmem>>, vector<1x1x16xf32>,
    } else {
    }
    return
  }
  func.func @transform_0(%arg0: i32, %arg1: i32, %arg2: i32, %arg3: memref<2x3xf32, #tpu.memory_space<smem>>) -> (i32, i32, i32) {
    %c0_i32 = arith.constant 0 : i32
    return %arg0, %arg1, %arg2 : i32, i32, i32
  }
  func.func @transform_1(%arg0: i32, %arg1: i32, %arg2: i32, %arg3: memref<2x3xf32, #tpu.memory_space<smem>>) -> (i32, i32, i32) {
    %c0_i32 = arith.constant 0 : i32
    return %arg0, %arg1, %arg2 : i32, i32, i32
  }
  func.func @transform_2(%arg0: i32, %arg1: i32, %arg2: i32, %arg3: memref<2x3xf32, #tpu.memory_space<smem>>) -> (i32, i32, i32) {
    %c0_i32 = arith.constant 0 : i32
    %c0_i32_0 = arith.constant 0 : i32
    %c0_i32_1 = arith.constant 0 : i32
    return %arg0, %c0_i32, %c0_i32_0 : i32, i32, i32
  }
  func.func @transform_3(%arg0: i32, %arg1: i32, %arg2: i32, %arg3: memref<2x3xf32, #tpu.memory_space<smem>>) -> (i32, i32, i32) {
    %c0_i32 = arith.constant 0 : i32
    %c0_i32_0 = arith.constant 0 : i32
    %c0_i32_1 = arith.constant 0 : i32
    return %arg0, %c0_i32, %c0_i32_0 : i32, i32, i32
  }
}

</mosaic_0001>

<llo_original>
// kernel: tpu_custom_call.1
$region0: #{tpu_custom_call.1}
  #allocation0 [shape = 'u32[]', space=smem, size = 0x4, offset = 0x4, fixed_abs, tag = 'smem constant byte address 0x4 - core index']
  #allocation1 [shape = 'u32[72,128]{1,0:T(1,128)}', space=vmem, size = 0x9000, scoped, tag = 'internal scratch']
  #allocation2 [shape = 's32[1]{0}', space=sflag, size = 0x4, scoped, tag = 'scoped memory for tpu_custom_call.1']
  #allocation3 [shape = 'u8[1024]{0}', space=smem, size = 0x400, scoped, tag = 'prefetched SMEM operand 0']
  %s0 = inlined_call_operand.hbm [shape: f32[2,3], index: 0, kind: input, shape index: {}]
  %s1 = inlined_call_operand.hbm [shape: f32[2,4,256], index: 1, kind: input, shape index: {}]
  %s2 = inlined_call_operand.hbm [shape: f32[2,4,256], index: 2, kind: output, shape index: {0}]
  %s3 = inlined_call_operand.hbm [shape: f32[2,1,16], index: 3, kind: output, shape index: {1}]
  %s4 = inlined_call_operand.hbm [shape: f32[2,1,16], index: 4, kind: output, shape index: {2}]
  %5 = xla_tuple %s2, %s3, %s4
  %s6 = sld [smem:[#allocation0]]
  $region61: #{tpu_custom_call.1} parent=0
    _
  %s8 = ssub.s32 1, %s6
  %s9 = scalar_select 0, %s8, %s6
  %s11 = sshll.u32 %s0, 4
  %s12 = int_to_ptr.hbm [resolvable:$true] %s11
  %14 = dma.hbm_to_smem %s12, 32, [#allocation3], [#allocation2]
  %16 = dma.done [#allocation2], 32
  %17 = sfence
  $region1: #{tpu_custom_call.1} parent=0
    #allocation4 [shape = 'u8[8192]{0}', space=vmem, size = 0x2000, scoped, tag = 'input window, operand 1']
    #allocation5 [shape = 's32[2]{0}', space=sflag, size = 0x8, scoped, tag = 'scoped memory for tpu_custom_call.1']
    #allocation6 [shape = 's32[2]{0}', space=sflag, size = 0x8, scoped, tag = 'scoped memory for tpu_custom_call.1']
    #allocation7 [shape = 'u8[8192]{0}', space=vmem, size = 0x2000, scoped, tag = 'output window, operand 0']
    #allocation8 [shape = 'u8[1024]{0}', space=vmem, size = 0x400, scoped, tag = 'output window, operand 1']
    #allocation9 [shape = 's32[2]{0}', space=sflag, size = 0x8, scoped, tag = 'scoped memory for tpu_custom_call.1']
    #allocation10 [shape = 'u8[1024]{0}', space=vmem, size = 0x400, scoped, tag = 'output window, operand 2']
    %18 = vsyncpa [#allocation5], 0
    %s19 = scalar_lea.sflag [#allocation5], 1
    %20 = vsyncpa %s19, 0
    %21 = vsyncpa [#allocation6], 0
    %s22 = scalar_lea.sflag [#allocation6], 1
    %23 = vsyncpa %s22, 0
    %24 = vsyncpa [#allocation9], 0
    %s25 = scalar_lea.sflag [#allocation9], 1
    %26 = vsyncpa %s25, 0
    loop: start=0, step=1, limit=4
    $region2: #{tpu_custom_call.1} parent=1 // loop_pre_header
      _
    $region3: #{tpu_custom_call.1} parent=1 // loop_header
      %s28 = sphi 0, %s32
      %p29 = scmp.ge.s32.totalorder %s28, 4
      %s35 = sphi 0, %s54
      %s36 = sphi 0, %s50
      %s37 = sphi 0, %s46
      %s38 = sphi 0, %s35
      %s39 = sphi 0, %s36
      %s40 = sphi 0, %s37
      %s41 = sphi 0, %s38
      %s42 = sphi 0, %s39
      %s43 = sphi 0, %s40
      %s61 = sphi 0, %s63
      %s64 = sphi 0, %s61
      %s65 = sphi 0, %s64
      %s81 = sphi 0, %s65
      %s91 = sphi 0, %s93
      %s94 = sphi 0, %s91
      %s95 = sphi 0, %s94
      %s111 = sphi 0, %s95
      %s117 = sphi 0, %s119
      %s120 = sphi 0, %s117
      %s121 = sphi 0, %s120
      %s137 = sphi 0, %s121
      %s143 = sphi 0, %s145
      %s146 = sphi 0, %s143
      %s147 = sphi 0, %s146
      %s163 = sphi 0, %s147
    $region4: #{tpu_custom_call.1} parent=1 // loop_header_branch
      %31 = sbr.rel (%p29) target = $region8
    $region5: #{tpu_custom_call.1} parent=1 // loop_body
      %s33 = ssub.s32 %s28, 1
      %s34 = ssub.s32 %s28, 2
      %s44 = sadd.s32 1, %s37
      %p45 = scmp.ge.s32.totalorder %s44, 1
      %s46 = scalar_select %p45, 0, %s44
      %s47 = sadd.s32 1, %s36
      %s48 = scalar_select %p45, %s47, %s36
      %p49 = scmp.ge.s32.totalorder %s48, 1
      %s50 = scalar_select %p49, 0, %s48
      %s51 = sadd.s32 1, %s35
      %s52 = scalar_select %p49, %s51, %s35
      %p53 = scmp.ge.s32.totalorder %s52, 2
      %s54 = scalar_select %p53, 0, %s52
      %s55 = ssub.s32 %s35, %s54
      %s56 = ssub.s32 %s36, %s50
      %s57 = sor.u32 %s55, %s56
      %s58 = ssub.s32 %s37, %s46
      %s59 = sor.u32 %s57, %s58
      %p60 = scmp.eq.s32.totalorder %s59, 0
      %s62 = sadd.s32 %s61, 1
      %s63 = scalar_select %p60, %s61, %s62
      %p66 = pneg %p60
      %p67 = scmp.eq.s32.totalorder %s28, 1
      %p68 = por %p66, %p67
      %p69 = scmp.ne.s32.totalorder %s61, %s64
      %p70 = scmp.eq.s32.totalorder %s28, 0
      %p71 = por %p69, %p70
      %p72 = scmp.ne.s32.totalorder %s61, %s64
      %p73 = scmp.eq.s32.totalorder %s33, 1
      %p74 = por %p72, %p73
      %p75 = scmp.ne.s32.totalorder %s64, %s65
      %p76 = scmp.eq.s32.totalorder %s33, 0
      %p77 = por %p75, %p76
      %p78 = scmp.ne.s32.totalorder %s64, %s65
      %p79 = scmp.eq.s32.totalorder %s34, 1
      %p80 = por %p78, %p79
      %p82 = scmp.ne.s32.totalorder %s65, %s81
      %p83 = scmp.eq.s32.totalorder %s34, 0
      %p84 = por %p82, %p83
      %s85 = ssub.s32 %s35, %s54
      %s86 = ssub.s32 %s36, %s50
      %s87 = sor.u32 %s85, %s86
      %s88 = ssub.s32 %s37, %s46
      %s89 = sor.u32 %s87, %s88
      %p90 = scmp.eq.s32.totalorder %s89, 0
      %s92 = sadd.s32 %s91, 1
      %s93 = scalar_select %p90, %s91, %s92
      %p96 = pneg %p90
      %p97 = scmp.eq.s32.totalorder %s28, 1
      %p98 = por %p96, %p97
      %p99 = scmp.ne.s32.totalorder %s91, %s94
      %p100 = scmp.eq.s32.totalorder %s28, 0
      %p101 = por %p99, %p100
      %p102 = scmp.ne.s32.totalorder %s91, %s94
      %p103 = scmp.eq.s32.totalorder %s33, 1
      %p104 = por %p102, %p103
      %p105 = scmp.ne.s32.totalorder %s94, %s95
      %p106 = scmp.eq.s32.totalorder %s33, 0
      %p107 = por %p105, %p106
      %p108 = scmp.ne.s32.totalorder %s94, %s95
      %p109 = scmp.eq.s32.totalorder %s34, 1
      %p110 = por %p108, %p109
      %p112 = scmp.ne.s32.totalorder %s95, %s111
      %p113 = scmp.eq.s32.totalorder %s34, 0
      %p114 = por %p112, %p113
      %s115 = ssub.s32 %s35, %s54
      %p116 = scmp.eq.s32.totalorder %s115, 0
      %s118 = sadd.s32 %s117, 1
      %s119 = scalar_select %p116, %s117, %s118
      %p122 = pneg %p116
      %p123 = scmp.eq.s32.totalorder %s28, 1
      %p124 = por %p122, %p123
      %p125 = scmp.ne.s32.totalorder %s117, %s120
      %p126 = scmp.eq.s32.totalorder %s28, 0
      %p127 = por %p125, %p126
      %p128 = scmp.ne.s32.totalorder %s117, %s120
      %p129 = scmp.eq.s32.totalorder %s33, 1
      %p130 = por %p128, %p129
      %p131 = scmp.ne.s32.totalorder %s120, %s121
      %p132 = scmp.eq.s32.totalorder %s33, 0
      %p133 = por %p131, %p132
      %p134 = scmp.ne.s32.totalorder %s120, %s121
      %p135 = scmp.eq.s32.totalorder %s34, 1
      %p136 = por %p134, %p135
      %p138 = scmp.ne.s32.totalorder %s121, %s137
      %p139 = scmp.eq.s32.totalorder %s34, 0
      %p140 = por %p138, %p139
      %s141 = ssub.s32 %s35, %s54
      %p142 = scmp.eq.s32.totalorder %s141, 0
      %s144 = sadd.s32 %s143, 1
      %s145 = scalar_select %p142, %s143, %s144
      %p148 = pneg %p142
      %p149 = scmp.eq.s32.totalorder %s28, 1
      %p150 = por %p148, %p149
      %p151 = scmp.ne.s32.totalorder %s143, %s146
      %p152 = scmp.eq.s32.totalorder %s28, 0
      %p153 = por %p151, %p152
      %p154 = scmp.ne.s32.totalorder %s143, %s146
      %p155 = scmp.eq.s32.totalorder %s33, 1
      %p156 = por %p154, %p155
      %p157 = scmp.ne.s32.totalorder %s146, %s147
      %p158 = scmp.eq.s32.totalorder %s33, 0
      %p159 = por %p157, %p158
      %p160 = scmp.ne.s32.totalorder %s146, %s147
      %p161 = scmp.eq.s32.totalorder %s34, 1
      %p162 = por %p160, %p161
      %p164 = scmp.ne.s32.totalorder %s147, %s163
      %p165 = scmp.eq.s32.totalorder %s34, 0
      %p166 = por %p164, %p165
      %p167 = scmp.le.s32.totalorder 1, %s28
      %p168 = scmp.lt.s32.totalorder %s28, 3
      %p169 = pnand %p167, %p168
      %p170 = pneg %p169
      // Predicated region
      $region9: #{tpu_custom_call.1} parent=5 // pred_check
        _
      $region10: #{tpu_custom_call.1} parent=5 // pred_check_branch
        %172 = sbr.rel (%p169) target = $region12
      $region11: #{tpu_custom_call.1} parent=5 // pred_region
        %s173 = ssub.s32 %s28, 1
      $region12: #{tpu_custom_call.1} parent=5 // pred_fallthru
        _
      %p174 = scmp.lt.s32.totalorder %s28, 2
      // Predicated region
      $region13: #{tpu_custom_call.1} parent=5 // pred_check
        %p175 = pneg %p174
      $region14: #{tpu_custom_call.1} parent=5 // pred_check_branch
        %177 = sbr.rel (%p175) target = $region16
      $region15: #{tpu_custom_call.1} parent=5 // pred_region
        // Predicated region
        $region17: #{tpu_custom_call.1} parent=15 // pred_check
          %p178 = pneg %p71
        $region18: #{tpu_custom_call.1} parent=15 // pred_check_branch
          %180 = sbr.rel (%p178) target = $region20
        $region19: #{tpu_custom_call.1} parent=15 // pred_region
          %s181 = sand.u32 %s61, 1
          %s182 = scalar_lea.sflag [#allocation5], %s181
          %s183 = sand.u32 %s61, 1
          %s184 = smul.addr %s183, 8
          %s185 = scalar_lea.vmem [#allocation4], %s184
          %s186 = smul.u32 2, %s37
          %188 = vsyncadd %s182, 0
          %s189 = smul.addr %s36, 2
          %s190 = sadd.s32 %s186, %s189
          %s191 = smul.addr %s35, 2
          %s192 = sadd.s32 %s190, %s191
          %s193 = smul.addr %s192, 4
          %s194 = scalar_lea.hbm %s1, %s193
          %s196 = sshll.u32 %s194, 4
          %s197 = int_to_ptr.hbm [resolvable:$true] %s196
          %s198 = sshll.u32 %s185, 4
          %s199 = int_to_ptr.vmem [resolvable:$true] %s198
          %201 = dma.hbm_to_vmem [thread:$0]  %s197, 128, %s199, %s182
        $region20: #{tpu_custom_call.1} parent=15 // pred_fallthru
          _
      $region16: #{tpu_custom_call.1} parent=5 // pred_fallthru
        _
      %p202 = scmp.le.s32.totalorder 1, %s28
      %p203 = scmp.lt.s32.totalorder %s28, 3
      %p204 = pnand %p202, %p203
      %p205 = pneg %p204
      // Predicated region
      $region21: #{tpu_custom_call.1} parent=5 // pred_check
        _
      $region22: #{tpu_custom_call.1} parent=5 // pred_check_branch
        %207 = sbr.rel (%p204) target = $region24
      $region23: #{tpu_custom_call.1} parent=5 // pred_region
        %s208 = ssub.s32 %s28, 1
        %s209 = sand.u32 %s64, 1
        %s210 = scalar_lea.sflag [#allocation5], %s209
        %s211 = sand.u32 %s64, 1
        %s212 = smul.addr %s211, 8
        %s213 = scalar_lea.vmem [#allocation4], %s212
        // Predicated region
        $region25: #{tpu_custom_call.1} parent=23 // pred_check
          %p214 = pneg %p77
        $region26: #{tpu_custom_call.1} parent=23 // pred_check_branch
          %216 = sbr.rel (%p214) target = $region28
        $region27: #{tpu_custom_call.1} parent=23 // pred_region
          %218 = dma.done %s210, 128
        $region28: #{tpu_custom_call.1} parent=23 // pred_fallthru
          _
        %s219 = sand.u32 %s64, 1
        %s220 = scalar_lea.sflag [#allocation5], %s219
        %s221 = sand.u32 %s64, 1
        %s222 = smul.addr %s221, 8
        %s223 = scalar_lea.vmem [#allocation4], %s222
        %p224 = pneg %p77
        %p225 = pneg %p74
        %p226 = pneg %p107
        %p227 = pneg %p104
        %s228 = sand.u32 %s94, 1
        %s229 = scalar_lea.sflag [#allocation6], %s228
        %s230 = sand.u32 %s94, 1
        %s231 = smul.addr %s230, 8
        %s232 = scalar_lea.vmem [#allocation7], %s231
        %p233 = pneg %p133
        %p234 = pneg %p130
        %s235 = sand.u32 %s33, 1
        %s236 = scalar_lea.sflag [#allocation9], %s235
        %s237 = sand.u32 %s120, 1
        %s238 = scalar_lea.vmem [#allocation8], %s237
        %p239 = pneg %p159
        %p240 = pneg %p156
        %s241 = sand.u32 %s33, 1
        %s242 = scalar_lea.sflag [#allocation9], %s241
        %s243 = sand.u32 %s146, 1
        %s244 = scalar_lea.vmem [#allocation10], %s243
        %s245 = smul.u32 2, %s40
        %s246 = smul.u32 2, %s40
        %s247 = smul.u32 %s38, 128
        %s248 = sadd.s32 %s247, 1
        %s249 = sld [smem:[#allocation3 + %s248]]
        %s250 = sadd.s32 %s247, 2
        %s251 = sld [smem:[#allocation3 + %s250]]
        %s252 = smul.u32 %s40, 256
        %v253 = vlaneseq
        %v254 = vand.u32 %v253, 127
        %v255 = vadd.s32 %v254, 128
        %v256 = vstv %s252
        %v257 = vadd.s32 %v256, %v254
        %v258 = vadd.s32 %v256, %v255
        %v259 = vcvt.s32.f32 %v257
        %v260 = vcvt.s32.f32 %v258
        %v261 = vrcp.pop 16.0
        %v262 = vmul.f32 16.0, %v261
        %v263 = vsub.f32 1.0, %v262
        %v264 = vmul.f32 %v261, %v263
        %v265 = vadd.f32 %v261, %v264
        %vm266 = vweird.f32 %v261
        %v267 = vsel %vm266, %v261, %v265
        %v268 = vmul.f32 %v259, %v267
        %v269 = vmul.f32 %v260, %v267
        %v270 = vfloor.f32 %v268
        %v271 = vfloor.f32 %v269
        %v272 = vmul.f32 %v270, 16.0
        %v273 = vmul.f32 %v271, 16.0
        %v274 = vsub.f32 %v259, %v272
        %v275 = vsub.f32 %v260, %v273
        %v276 = vmul.f32 %v274, 0.13333334
        %v277 = vmul.f32 %v275, 0.13333334
        %v278 = vsub.f32 %v276, 1.0
        %v279 = vsub.f32 %v277, 1.0
        %v280 = vstv %s249
        %v281 = vsub.f32 %v280, %v278
        %v282 = vsub.f32 %v280, %v279
        %v283 = vand.u32 2147483647, %v281
        %v284 = vand.u32 2147483647, %v282
        %v285 = vsub.f32 1.0, %v283
        %v286 = vsub.f32 1.0, %v284
        %v287 = vmax.f32 %v285, 0.0
        %v288 = vmax.f32 %v286, 0.0
        %v289 = vmul.f32 %v270, 0.13333334
        %v290 = vmul.f32 %v271, 0.13333334
        %v291 = vsub.f32 %v289, 1.0
        %v292 = vsub.f32 %v290, 1.0
        %v293 = vstv %s251
        %v294 = vsub.f32 %v293, %v291
        %v295 = vsub.f32 %v293, %v292
        %v296 = vand.u32 2147483647, %v294
        %v297 = vand.u32 2147483647, %v295
        %v298 = vsub.f32 1.0, %v296
        %v299 = vsub.f32 1.0, %v297
        %v300 = vmax.f32 %v298, 0.0
        %v301 = vmax.f32 %v299, 0.0
        %v302 = vmul.f32 %v287, %v300
        %v303 = vmul.f32 %v288, %v301
        %v304 = vld [vmem:[%s213] sm:$0xff]
        %v307 = vrot.slane %v303, 4
        %vm308 = vcmask 1043456
        %v309 = vsel %vm308, %v302, %v307
        %v311 = vmul.f32 %v304, %v309
        %312 = vst [vmem:[%s232] sm:$0xff] %v311
        %p313 = scmp.eq.s32.totalorder %s39, 0
        %p314 = scmp.eq.s32.totalorder %s40, 0
        %p315 = pnand %p313, %p314
        %p316 = pneg %p315
        // Predicated region
        $region29: #{tpu_custom_call.1} parent=23 // pred_check
          _
        $region30: #{tpu_custom_call.1} parent=23 // pred_check_branch
          %318 = sbr.rel (%p315) target = $region32
        $region31: #{tpu_custom_call.1} parent=23 // pred_region
          %v319 = vcvt.s32.f32 %v254
          %v320 = vmul.f32 %v319, 0.13333334
          %v321 = vsub.f32 %v320, 1.0
          %v322 = vsub.f32 %v280, %v321
          %v323 = vand.u32 2147483647, %v322
          %v324 = vsub.f32 1.0, %v323
          %v325 = vmax.f32 %v324, 0.0
          %vm326 = vcmask 122880
          %327 = vst.msk [vmem:[%s238] sm:$0x1] %vm326, %v325
          %v328 = vsub.f32 %v293, %v321
          %v329 = vand.u32 2147483647, %v328
          %v330 = vsub.f32 1.0, %v329
          %v331 = vmax.f32 %v330, 0.0
          %332 = vst.msk [vmem:[%s244] sm:$0x1] %vm326, %v331
        $region32: #{tpu_custom_call.1} parent=23 // pred_fallthru
          _
        %s333 = sand.u32 %s94, 1
        %s334 = scalar_lea.sflag [#allocation6], %s333
        %s335 = sand.u32 %s94, 1
        %s336 = smul.addr %s335, 8
        %s337 = scalar_lea.vmem [#allocation7], %s336
        %s338 = sand.u32 %s33, 1
        %s339 = scalar_lea.sflag [#allocation9], %s338
        %s340 = sand.u32 %s120, 1
        %s341 = scalar_lea.vmem [#allocation8], %s340
        %s342 = sand.u32 %s33, 1
        %s343 = scalar_lea.sflag [#allocation9], %s342
        %s344 = sand.u32 %s146, 1
        %s345 = scalar_lea.vmem [#allocation10], %s344
        // Predicated region
        $region33: #{tpu_custom_call.1} parent=23 // pred_check
          %p346 = pneg %p104
        $region34: #{tpu_custom_call.1} parent=23 // pred_check_branch
          %348 = sbr.rel (%p346) target = $region36
        $region35: #{tpu_custom_call.1} parent=23 // pred_region
          %s349 = smul.u32 2, %s40
          %351 = vsyncadd %s334, 0
          %s352 = smul.addr %s39, 2
          %s353 = sadd.s32 %s349, %s352
          %s354 = smul.addr %s38, 2
          %s355 = sadd.s32 %s353, %s354
          %s356 = smul.addr %s355, 4
          %s357 = scalar_lea.hbm %s2, %s356
          %s359 = sshll.u32 %s337, 4
          %s360 = int_to_ptr.vmem [resolvable:$true] %s359
          %s361 = sshll.u32 %s357, 4
          %s362 = int_to_ptr.hbm [resolvable:$true] %s361
          %364 = dma.vmem_to_hbm [thread:$0]  %s360, 128, %s362, %s334
        $region36: #{tpu_custom_call.1} parent=23 // pred_fallthru
          _
        // Predicated region
        $region37: #{tpu_custom_call.1} parent=23 // pred_check
          %p365 = pneg %p130
        $region38: #{tpu_custom_call.1} parent=23 // pred_check_branch
          %367 = sbr.rel (%p365) target = $region40
        $region39: #{tpu_custom_call.1} parent=23 // pred_region
          %369 = vsyncadd %s339, 0
          %s370 = scalar_lea.hbm %s3, %s38
          %s372 = sshll.u32 %s341, 4
          %s373 = int_to_ptr.vmem [resolvable:$true] %s372
          %s374 = sshll.u32 %s370, 4
          %s375 = int_to_ptr.hbm [resolvable:$true] %s374
          %377 = dma.vmem_to_hbm [thread:$0]  %s373, 16, %s375, %s339
        $region40: #{tpu_custom_call.1} parent=23 // pred_fallthru
          _
        // Predicated region
        $region41: #{tpu_custom_call.1} parent=23 // pred_check
          %p378 = pneg %p156
        $region42: #{tpu_custom_call.1} parent=23 // pred_check_branch
          %380 = sbr.rel (%p378) target = $region44
        $region43: #{tpu_custom_call.1} parent=23 // pred_region
          %382 = vsyncadd %s343, 0
          %s383 = scalar_lea.hbm %s4, %s38
          %s385 = sshll.u32 %s345, 4
          %s386 = int_to_ptr.vmem [resolvable:$true] %s385
          %s387 = sshll.u32 %s383, 4
          %s388 = int_to_ptr.hbm [resolvable:$true] %s387
          %390 = dma.vmem_to_hbm [thread:$0]  %s386, 16, %s388, %s343
        $region44: #{tpu_custom_call.1} parent=23 // pred_fallthru
          _
      $region24: #{tpu_custom_call.1} parent=5 // pred_fallthru
        _
      %p391 = scmp.le.s32.totalorder 2, %s28
      // Predicated region
      $region45: #{tpu_custom_call.1} parent=5 // pred_check
        %p392 = pneg %p391
      $region46: #{tpu_custom_call.1} parent=5 // pred_check_branch
        %394 = sbr.rel (%p392) target = $region48
      $region47: #{tpu_custom_call.1} parent=5 // pred_region
        %s395 = ssub.s32 %s28, 2
        // Predicated region
        $region49: #{tpu_custom_call.1} parent=47 // pred_check
          %p396 = pneg %p110
        $region50: #{tpu_custom_call.1} parent=47 // pred_check_branch
          %398 = sbr.rel (%p396) target = $region52
        $region51: #{tpu_custom_call.1} parent=47 // pred_region
          %s399 = sand.u32 %s95, 1
          %s400 = scalar_lea.sflag [#allocation6], %s399
          %s401 = sand.u32 %s95, 1
          %s402 = smul.addr %s401, 8
          %s403 = scalar_lea.vmem [#allocation7], %s402
          %405 = dma.done %s400, 128
        $region52: #{tpu_custom_call.1} parent=47 // pred_fallthru
          _
        // Predicated region
        $region53: #{tpu_custom_call.1} parent=47 // pred_check
          %p406 = pneg %p136
        $region54: #{tpu_custom_call.1} parent=47 // pred_check_branch
          %408 = sbr.rel (%p406) target = $region56
        $region55: #{tpu_custom_call.1} parent=47 // pred_region
          %s409 = sand.u32 %s34, 1
          %s410 = scalar_lea.sflag [#allocation9], %s409
          %s411 = sand.u32 %s121, 1
          %s412 = scalar_lea.vmem [#allocation8], %s411
          %414 = dma.done %s410, 16
        $region56: #{tpu_custom_call.1} parent=47 // pred_fallthru
          _
        // Predicated region
        $region57: #{tpu_custom_call.1} parent=47 // pred_check
          %p415 = pneg %p162
        $region58: #{tpu_custom_call.1} parent=47 // pred_check_branch
          %417 = sbr.rel (%p415) target = $region60
        $region59: #{tpu_custom_call.1} parent=47 // pred_region
          %s418 = sand.u32 %s34, 1
          %s419 = scalar_lea.sflag [#allocation9], %s418
          %s420 = sand.u32 %s147, 1
          %s421 = scalar_lea.vmem [#allocation10], %s420
          %423 = dma.done %s419, 16
        $region60: #{tpu_custom_call.1} parent=47 // pred_fallthru
          _
      $region48: #{tpu_custom_call.1} parent=5 // pred_fallthru
        _
    $region6: #{tpu_custom_call.1} parent=1 // loop_footer
      %s32 = sadd.s32 1, %s28
    $region7: #{tpu_custom_call.1} parent=1 // loop_footer_branch
      %27 = sbr.rel target = $region3
    $region8: #{tpu_custom_call.1} parent=1 // loop_exit
      _
    %424 = vsyncpa [#allocation5], 1
    %s425 = scalar_lea.sflag [#allocation5], 1
    %426 = vsyncpa %s425, 1
    %427 = vsyncpa [#allocation6], 1
    %s428 = scalar_lea.sflag [#allocation6], 1
    %429 = vsyncpa %s428, 1
    %430 = vsyncpa [#allocation9], 1
    %s431 = scalar_lea.sflag [#allocation9], 1
    %432 = vsyncpa %s431, 1

</llo_original>
